<compile_context>
chip_gen: v5e
topology: v5e:2x2
jax: 0.10.0
libtpu: 0.0.40
codegen_flags: <defaults>
</compile_context>

<pallas_src>
import functools

import jax
import jax.numpy as jnp
from jax import lax
from jax.experimental import pallas as pl
from jax.experimental.pallas import tpu as pltpu

# Multi-Similarity loss hyper-parameters (paper / reference defaults).
THRESH = 0.5
MARGIN = 0.1
SCALE_POS = 2.0
SCALE_NEG = 40.0

_NEG_INF = -1e30  # finite "-inf" sentinel (avoids inf-inf/NaN in the online LSE)


def _round_up(v, m):
    return ((v + m - 1) // m) * m


def _fused_kernel(x_ref, w_ref, b_ref, labr_ref, labc_ref,          # inputs
                  loss_ref, prec_ref,                                # outputs (8,128) blocks
                  m_ref, l_ref, lab_ref, f_ref, xb_ref, ms_ref,      # VMEM scratch
                  *, tile_c, tq, n_half, n_blocks_split, blocks_per_step,
                  n_true, mxu_dtype):
    r = pl.program_id(0)               # row split (parallel axis; 1 or 2 splits)
    c = pl.program_id(1)               # class tile (arbitrary / reduction axis)
    nc = pl.num_programs(1)
    row0 = pl.multiple_of(r * n_half, n_half)
    rows = pl.ds(row0, n_half)
    inv_n = 1.0 / n_true

    # -------- first class tile (per split): init LSE state, normalize embeddings, cast ------
    @pl.when(c == 0)
    def _init():
        m_ref[rows, :] = jnp.full((n_half, 1), _NEG_INF, jnp.float32)
        l_ref[rows, :] = jnp.zeros((n_half, 1), jnp.float32)
        lab_ref[rows, :] = jnp.zeros((n_half, 1), jnp.float32)
        ms_ref[rows, :] = jnp.zeros((n_half, 1), jnp.float32)
        # L2-normalize ALL rows once (needed as similarity columns); kept resident in f32.
        x32 = x_ref[...]
        inv_norm = lax.rsqrt(jnp.sum(x32 * x32, axis=-1, keepdims=True) + 1e-12)
        f_ref[...] = x32 * inv_norm
        # One-time cast of this split's rows for the MXU class-head matmul (bf16 by default).
        xb_ref[rows, :] = x_ref[rows, :].astype(mxu_dtype)

    # -------------- every step: one class tile of the softmax head (online LSE) -------------
    logits = lax.dot_general(xb_ref[rows, :], w_ref[...],           # (Nh, D) x (tc, D)^T
                             (((1,), (1,)), ((), ())),
                             preferred_element_type=jnp.float32)    # (Nh, tc) f32
    logits = logits + b_ref[...]

    labq_rows = labr_ref[rows, :]                                    # (Nh, 1) int32
    col = lax.broadcasted_iota(jnp.int32, logits.shape, 1) + c * tile_c
    # in-kernel label-logit gather (no materialized one-hot)
    lab_ref[rows, :] += jnp.sum(jnp.where(col == labq_rows, logits, 0.0),
                                axis=-1, keepdims=True)

    tile_max = jnp.max(logits, axis=-1, keepdims=True)
    m_old = m_ref[rows, :]
    m_new = jnp.maximum(m_old, tile_max)
    l_ref[rows, :] = (l_ref[rows, :] * jnp.exp(m_old - m_new)
                      + jnp.sum(jnp.exp(logits - m_new), axis=-1, keepdims=True))
    m_ref[rows, :] = m_new

    # ---- Multi-Similarity: this step's share of anchor-row blocks (interleaves MS MXU ------
    # ---- work with the W-tile DMA pipeline instead of front-loading it in step 0)      ------
    labc = labc_ref[...]                                             # (1, Np) int32
    col_valid = labc >= 0                                            # padded cols masked out
    start_block = c * blocks_per_step
    n_valid = jnp.maximum(0, jnp.minimum(blocks_per_step, n_blocks_split - start_block))

    def _ms_block(j, carry):
        rb = start_block + j
        r0 = pl.multiple_of(row0 + rb * tq, tq)
        fq = f_ref[pl.ds(r0, tq), :]                                 # (tq, D) f32
        # cosine similarity block, kept in f32 (exp(40*sim) is rounding-sensitive)
        sim = lax.dot_general(fq, f_ref[...], (((1,), (1,)), ((), ())),
                              preferred_element_type=jnp.float32)    # (tq, Np)
        labq = labr_ref[pl.ds(r0, tq), :]                            # (tq, 1)
        same = labq == labc
        row_id = lax.broadcasted_iota(jnp.int32, sim.shape, 0) + r0
        col_id = lax.broadcasted_iota(jnp.int32, sim.shape, 1)
        not_self = row_id != col_id                                  # exact diagonal mask
        pos_mask = jnp.logical_and(jnp.logical_and(same, not_self), col_valid)
        neg_mask = jnp.logical_and(jnp.logical_not(same), col_valid)

        min_pos = jnp.min(jnp.where(pos_mask, sim, jnp.inf), axis=-1, keepdims=True)
        max_neg = jnp.max(jnp.where(neg_mask, sim, -jnp.inf), axis=-1, keepdims=True)

        # pair mining (hard negatives / hard positives)
        mined_neg = jnp.logical_and(neg_mask, (sim + MARGIN) > min_pos)
        mined_pos = jnp.logical_and(pos_mask, (sim - MARGIN) < max_neg)

        pos_sum = jnp.sum(jnp.where(mined_pos, jnp.exp(-SCALE_POS * (sim - THRESH)), 0.0),
                          axis=-1, keepdims=True)
        neg_sum = jnp.sum(jnp.where(mined_neg, jnp.exp(SCALE_NEG * (sim - THRESH)), 0.0),
                          axis=-1, keepdims=True)
        pos_cnt = jnp.sum(mined_pos.astype(jnp.float32), axis=-1, keepdims=True)
        neg_cnt = jnp.sum(mined_neg.astype(jnp.float32), axis=-1, keepdims=True)
        anchor_valid = labq >= 0                                      # padded anchors -> 0
        valid = jnp.logical_and(jnp.logical_and(pos_cnt > 0.0, neg_cnt > 0.0), anchor_valid)

        per_anchor = ((1.0 / SCALE_POS) * jnp.log(1.0 + pos_sum)
                      + (1.0 / SCALE_NEG) * jnp.log(1.0 + neg_sum))
        ms_ref[pl.ds(r0, tq), :] = jnp.where(valid, per_anchor, 0.0)
        return carry

    lax.fori_loop(0, n_valid, _ms_block, 0)

    # -------------- last class tile: finalize this split's partial loss / prec --------------
    @pl.when(c == nc - 1)
    def _finalize():
        row_valid = labq_rows >= 0                                   # mask padded rows
        ce = m_ref[rows, :] + jnp.log(l_ref[rows, :]) - lab_ref[rows, :]
        ce = jnp.where(row_valid, ce, 0.0)
        part = (jnp.sum(ce, axis=0, keepdims=True)
                + jnp.sum(ms_ref[rows, :], axis=0, keepdims=True)) * inv_n       # (1, 1)
        # top-1 correct <=> label logit equals the global max (tie-order differences vs
        # torch.argmax only matter for bit-equal logits across classes).
        correct = jnp.logical_and(row_valid, lab_ref[rows, :] == m_ref[rows, :])
        prec = 100.0 * jnp.sum(correct.astype(jnp.float32), axis=0, keepdims=True) * inv_n
        loss_ref[...] = jnp.broadcast_to(part, loss_ref.shape)       # lane-dense (8,128) store
        prec_ref[...] = jnp.broadcast_to(prec, prec_ref.shape)


def ms_softmax_loss(x, label, W, b, *, mxu_dtype=jnp.bfloat16, class_tile=None, row_splits=1):
    """x: (B, U, D), label: (B,) int, W: (C, D), b: (C,).  Returns (nlossS + nlossP, prec1).

    mxu_dtype: operand dtype for the class-head matmul (default bf16; f32 accumulation and all
    softmax/exp/log + Multi-Similarity math stay in f32).  Pass jnp.float32 for exact-f32 head.
    row_splits: set to 2 on v7x (two TensorCores) to split anchor/CE rows across cores.
    """
    B, U, D = x.shape
    C = W.shape[0]
    N = B * U
    n_splits = int(row_splits)

    # Physical VMEM (for class-tile sizing and vmem limit); conservative fallback = v7x 64 MiB.
    try:
        phys_vmem = int(pltpu.get_tpu_info().vmem_capacity_bytes)
    except Exception:
        phys_vmem = 64 * 2**20
    if class_tile is None:
        class_tile = 1024 if phys_vmem >= 100 * 2**20 else 512

    # ---- row padding: keep (N, *) sublane-aligned, splits even, MS tiles 128/256-aligned ----
    if N <= 512 * n_splits:
        Np = _round_up(N, 8 * n_splits)
    else:
        Np = _round_up(N, 128 * n_splits)
    Nh = Np // n_splits
    if Nh <= 512:
        tq = Nh
    elif Nh % 256 == 0:
        tq = 256
    else:
        tq = 128
    n_blocks_split = Nh // tq

    xf = x.reshape(N, D).astype(jnp.float32)
    label_flat = jnp.repeat(label.astype(jnp.int32), U)             # repeat_interleave(U)
    if Np != N:
        xf = jnp.pad(xf, ((0, Np - N), (0, 0)))
        label_flat = jnp.pad(label_flat, (0, Np - N), constant_values=-1)
    labr = label_flat.reshape(Np, 1)
    labc = label_flat.reshape(1, Np)

    # ---- class tiling; W stays (C, D) — no host-side transpose, bf16 tiles halve W DMA ----
    tc = C if C <= class_tile else class_tile
    Cp = _round_up(C, tc)
    Wk = W.astype(mxu_dtype)
    bk = b.astype(jnp.float32)
    if Cp != C:
        Wk = jnp.pad(Wk, ((0, Cp - C), (0, 0)))
        bk = jnp.pad(bk, (0, Cp - C), constant_values=_NEG_INF)     # neutral for online LSE
    bk = bk.reshape(1, Cp)
    num_c_tiles = Cp // tc
    blocks_per_step = -(-n_blocks_split // num_c_tiles)             # cdiv

    kernel = functools.partial(
        _fused_kernel, tile_c=tc, tq=tq, n_half=Nh,
        n_blocks_split=n_blocks_split, blocks_per_step=blocks_per_step,
        n_true=N, mxu_dtype=mxu_dtype)

    # VMEM budget (generous upper bound), capped at 0.75 * physical VMEM.
    isz_w = jnp.dtype(mxu_dtype).itemsize
    est = (2 * Np * D * 4                      # x (double-buffered f32)
           + 2 * tc * D * isz_w + 4 * tc * 4   # W / bias tiles (double-buffered)
           + Np * D * (4 + isz_w)              # f_ref (f32) + xb_ref (mxu dtype)
           + 10 * Np * 4                       # (Np,1) scratch + labels
           + 8 * Nh * tc * 4                   # logits temporaries
           + 12 * tq * Np * 4                  # similarity / mask temporaries
           + 8 * n_splits * 8 * 128 * 4)       # outputs
    vmem_limit = int(min(int(0.75 * phys_vmem), max(32 * 2**20, 2 * est)))

    cost = pl.CostEstimate(
        flops=int(2 * Np * D * Cp + 2 * Np * Np * D),
        transcendentals=int(Np * Cp + 2 * Np * Np + 2 * Np),
        bytes_accessed=int(Np * D * 4 + Cp * D * isz_w + 4 * Cp + 8 * Np
                           + 2 * n_splits * 8 * 128 * 4),
    )

    loss_p, prec_p = pl.pallas_call(
        kernel,
        out_shape=(jax.ShapeDtypeStruct((n_splits * 8, 128), jnp.float32),
                   jax.ShapeDtypeStruct((n_splits * 8, 128), jnp.float32)),
        grid=(n_splits, num_c_tiles),
        in_specs=[
            pl.BlockSpec((Np, D), lambda r, c: (0, 0)),     # x: f32, resident across all steps
            pl.BlockSpec((tc, D), lambda r, c: (c, 0)),     # W class tile (no transpose)
            pl.BlockSpec((1, tc), lambda r, c: (0, c)),     # bias class tile
            pl.BlockSpec((Np, 1), lambda r, c: (0, 0)),     # labels, column form
            pl.BlockSpec((1, Np), lambda r, c: (0, 0)),     # labels, row form
        ],
        out_specs=(pl.BlockSpec((8, 128), lambda r, c: (r, 0)),
                   pl.BlockSpec((8, 128), lambda r, c: (r, 0))),
        scratch_shapes=[
            pltpu.VMEM((Np, 1), jnp.float32),   # running row max (online LSE)
            pltpu.VMEM((Np, 1), jnp.float32),   # running softmax denominator
            pltpu.VMEM((Np, 1), jnp.float32),   # label logit accumulator
            pltpu.VMEM((Np, D), jnp.float32),   # L2-normalized embeddings (f32 for MS)
            pltpu.VMEM((Np, D), mxu_dtype),     # MXU-dtype copy of x for the class head
            pltpu.VMEM((Np, 1), jnp.float32),   # per-anchor MS loss
        ],
        compiler_params=pltpu.CompilerParams(
            dimension_semantics=("parallel", "arbitrary"),   # row split || class reduction
            vmem_limit_bytes=vmem_limit),
        cost_estimate=cost,
    )(xf, Wk, bk, labr, labc)

    loss = jnp.sum(loss_p.reshape(n_splits, 8, 128)[:, 0, 0])
    prec = jnp.sum(prec_p.reshape(n_splits, 8, 128)[:, 0, 0])
    return loss, prec


if __name__ == "__main__":
    key = jax.random.PRNGKey(0)
    B, U, D, C = 4, 2, 32, 16      # 4 speakers x 2 utterances, 32-dim embeddings, 16 classes
    kx, kw = jax.random.split(key, 2)

    x = jax.random.normal(kx, (B, U, D), dtype=jnp.float32)
    label = jnp.array([0, 1, 2, 3], dtype=jnp.int32)

    # Deterministic "nn.Linear(D, C)" parameters (synthetic init, no checkpoint load).
    W = 0.1 * jax.random.normal(kw, (C, D), dtype=jnp.float32)
    b = jnp.zeros((C,), dtype=jnp.float32)

    loss, prec1 = jax.jit(ms_softmax_loss)(x, label, W, b)
    jax.block_until_ready((loss, prec1))
    assert bool(jnp.isfinite(loss)) and bool(jnp.isfinite(prec1))
    print("KERNEL_OK")
</pallas_src>

<mosaic_0001>
module attributes {stable_mosaic.version = 11 : i64} {
  func.func @_fused_kernel(%arg0: i32, %arg1: i32, %arg2: memref<8x32xf32, #tpu.memory_space<vmem>>, %arg3: memref<16x32xbf16, #tpu.memory_space<vmem>>, %arg4: memref<1x16xf32, #tpu.memory_space<vmem>>, %arg5: memref<8x1xi32, #tpu.memory_space<vmem>>, %arg6: memref<1x8xi32, #tpu.memory_space<vmem>>, %arg7: memref<8x128xf32, #tpu.memory_space<vmem>>, %arg8: memref<8x128xf32, #tpu.memory_space<vmem>>, %arg9: memref<8x1xf32, #tpu.memory_space<vmem>>, %arg10: memref<8x1xf32, #tpu.memory_space<vmem>>, %arg11: memref<8x1xf32, #tpu.memory_space<vmem>>, %arg12: memref<8x32xf32, #tpu.memory_space<vmem>>, %arg13: memref<8x32xbf16, #tpu.memory_space<vmem>>, %arg14: memref<8x1xf32, #tpu.memory_space<vmem>>) attributes {dimension_semantics = [#tpu.dimension_semantics<parallel>, #tpu.dimension_semantics<arbitrary>], iteration_bounds = array<i64: 1, 1>, scalar_prefetch = 0 : i64, scratch_operands = 6 : i64, tpu.core_type = #tpu.core_type<tc>, window_params = [{pipeline_mode = #tpu.pipeline_mode<synchronous>, transform_indices = @transform_0, window_bounds = array<i64: 8, 32>}, {transform_indices = @transform_1, window_bounds = array<i64: 16, 32>}, {transform_indices = @transform_2, window_bounds = array<i64: 1, 16>}, {pipeline_mode = #tpu.pipeline_mode<synchronous>, transform_indices = @transform_3, window_bounds = array<i64: 8, 1>}, {pipeline_mode = #tpu.pipeline_mode<synchronous>, transform_indices = @transform_4, window_bounds = array<i64: 1, 8>}, {transform_indices = @transform_5, window_bounds = array<i64: 8, 128>}, {transform_indices = @transform_6, window_bounds = array<i64: 8, 128>}]} {
    %c8_i32 = arith.constant 8 : i32
    %0 = arith.muli %arg0, %c8_i32 : i32
    %1 = tpu.assume_multiple %0, 8 : i32
    %c0_i32 = arith.constant 0 : i32
    %2 = arith.cmpi eq, %arg1, %c0_i32 : i32
    %3 = arith.extui %2 : i1 to i32
    %c0_i32_0 = arith.constant 0 : i32
    %4 = arith.cmpi ne, %3, %c0_i32_0 : i32
    scf.if %4 {
      %cst_27 = arith.constant -1.000000e+30 : f32
      %61 = vector.broadcast %cst_27 : f32 to vector<8x1xf32>
      %62 = arith.index_cast %1 : i32 to index
      %c0_28 = arith.constant 0 : index
      %63 = vector.load %arg9[%62, %c0_28] : memref<8x1xf32, #tpu.memory_space<vmem>>, vector<8x1xf32>
      tpu.vector_store %arg9[%62, %c0_28], %61 {strides = array<i32>} : memref<8x1xf32, #tpu.memory_space<vmem>>, vector<8x1xf32>,
      %cst_29 = arith.constant 0.000000e+00 : f32
      %64 = vector.broadcast %cst_29 : f32 to vector<8x1xf32>
      %65 = arith.index_cast %1 : i32 to index
      %c0_30 = arith.constant 0 : index
      %66 = vector.load %arg10[%65, %c0_30] : memref<8x1xf32, #tpu.memory_space<vmem>>, vector<8x1xf32>
      tpu.vector_store %arg10[%65, %c0_30], %64 {strides = array<i32>} : memref<8x1xf32, #tpu.memory_space<vmem>>, vector<8x1xf32>,
      %cst_31 = arith.constant 0.000000e+00 : f32
      %67 = vector.broadcast %cst_31 : f32 to vector<8x1xf32>
      %68 = arith.index_cast %1 : i32 to index
      %c0_32 = arith.constant 0 : index
      %69 = vector.load %arg11[%68, %c0_32] : memref<8x1xf32, #tpu.memory_space<vmem>>, vector<8x1xf32>
      tpu.vector_store %arg11[%68, %c0_32], %67 {strides = array<i32>} : memref<8x1xf32, #tpu.memory_space<vmem>>, vector<8x1xf32>,
      %cst_33 = arith.constant 0.000000e+00 : f32
      %70 = vector.broadcast %cst_33 : f32 to vector<8x1xf32>
      %71 = arith.index_cast %1 : i32 to index
      %c0_34 = arith.constant 0 : index
      %72 = vector.load %arg14[%71, %c0_34] : memref<8x1xf32, #tpu.memory_space<vmem>>, vector<8x1xf32>
      tpu.vector_store %arg14[%71, %c0_34], %70 {strides = array<i32>} : memref<8x1xf32, #tpu.memory_space<vmem>>, vector<8x1xf32>,
      %c0_35 = arith.constant 0 : index
      %c0_36 = arith.constant 0 : index
      %73 = vector.load %arg2[%c0_35, %c0_36] : memref<8x32xf32, #tpu.memory_space<vmem>>, vector<8x32xf32>
      %74 = arith.mulf %73, %73 : vector<8x32xf32>
      %cst_37 = arith.constant dense<0.000000e+00> : vector<8xf32>
      %75 = vector.multi_reduction <add>, %74, %cst_37 [1] : vector<8x32xf32> to vector<8xf32>
      %76 = vector.shape_cast %75 : vector<8xf32> to vector<8x1xf32>
      %cst_38 = arith.constant 9.99999996E-13 : f32
      %77 = vector.broadcast %cst_38 : f32 to vector<8x1xf32>
      %78 = arith.addf %76, %77 : vector<8x1xf32>
      %79 = math.rsqrt %78 : vector<8x1xf32>
      %80 = vector.broadcast %79 : vector<8x1xf32> to vector<8x32xf32>
      %81 = arith.mulf %73, %80 : vector<8x32xf32>
      %c0_39 = arith.constant 0 : index
      %c0_40 = arith.constant 0 : index
      %82 = vector.load %arg12[%c0_39, %c0_40] : memref<8x32xf32, #tpu.memory_space<vmem>>, vector<8x32xf32>
      tpu.vector_store %arg12[%c0_39, %c0_40], %81 {strides = array<i32>} : memref<8x32xf32, #tpu.memory_space<vmem>>, vector<8x32xf32>,
      %83 = arith.index_cast %1 : i32 to index
      %c0_41 = arith.constant 0 : index
      %84 = vector.load %arg2[%83, %c0_41] : memref<8x32xf32, #tpu.memory_space<vmem>>, vector<8x32xf32>
      %85 = arith.truncf %84 : vector<8x32xf32> to vector<8x32xbf16>
      %86 = arith.index_cast %1 : i32 to index
      %c0_42 = arith.constant 0 : index
      %87 = vector.load %arg13[%86, %c0_42] : memref<8x32xbf16, #tpu.memory_space<vmem>>, vector<8x32xbf16>
      tpu.vector_store %arg13[%86, %c0_42], %85 {strides = array<i32>} : memref<8x32xbf16, #tpu.memory_space<vmem>>, vector<8x32xbf16>,
    } else {
    }
    %5 = arith.index_cast %1 : i32 to index
    %c0 = arith.constant 0 : index
    %6 = vector.load %arg13[%5, %c0] : memref<8x32xbf16, #tpu.memory_space<vmem>>, vector<8x32xbf16>
    %c0_1 = arith.constant 0 : index
    %c0_2 = arith.constant 0 : index
    %7 = vector.load %arg3[%c0_1, %c0_2] : memref<16x32xbf16, #tpu.memory_space<vmem>>, vector<16x32xbf16>
    %cst = arith.constant dense<0.000000e+00> : vector<8x16xf32>
    %8 = tpu.matmul %6, %7, %cst {dimension_numbers = #tpu.dot_dimension_numbers<[1], [1], [0], [0], [0, 0, 1, 0], [], []>} : vector<8x32xbf16>, vector<16x32xbf16>, vector<8x16xf32> -> vector<8x16xf32>
    %c0_3 = arith.constant 0 : index
    %c0_4 = arith.constant 0 : index
    %9 = vector.load %arg4[%c0_3, %c0_4] : memref<1x16xf32, #tpu.memory_space<vmem>>, vector<1x16xf32>
    %10 = vector.broadcast %9 : vector<1x16xf32> to vector<8x16xf32>
    %11 = arith.addf %8, %10 : vector<8x16xf32>
    %12 = arith.index_cast %1 : i32 to index
    %c0_5 = arith.constant 0 : index
    %13 = vector.load %arg5[%12, %c0_5] : memref<8x1xi32, #tpu.memory_space<vmem>>, vector<8x1xi32>
    %14 = tpu.iota {dimensions = array<i32: 1>} : vector<8x16xi32>
    %c16_i32 = arith.constant 16 : i32
    %15 = arith.muli %arg1, %c16_i32 : i32
    %16 = vector.broadcast %15 : i32 to vector<8x16xi32>
    %17 = arith.addi %14, %16 : vector<8x16xi32>
    %18 = arith.index_cast %1 : i32 to index
    %c0_6 = arith.constant 0 : index
    %19 = vector.load %arg11[%18, %c0_6] : memref<8x1xf32, #tpu.memory_space<vmem>>, vector<8x1xf32>
    %20 = vector.broadcast %13 : vector<8x1xi32> to vector<8x16xi32>
    %21 = arith.cmpi eq, %17, %20 : vector<8x16xi32>
    %cst_7 = arith.constant 0.000000e+00 : f32
    %22 = vector.broadcast %cst_7 : f32 to vector<8x16xf32>
    %23 = arith.select %21, %11, %22 : vector<8x16xi1>, vector<8x16xf32>
    %cst_8 = arith.constant dense<0.000000e+00> : vector<8xf32>
    %24 = vector.multi_reduction <add>, %23, %cst_8 [1] : vector<8x16xf32> to vector<8xf32>
    %25 = vector.shape_cast %24 : vector<8xf32> to vector<8x1xf32>
    %26 = arith.addf %19, %25 : vector<8x1xf32>
    %27 = arith.index_cast %1 : i32 to index
    %c0_9 = arith.constant 0 : index
    %28 = vector.load %arg11[%27, %c0_9] : memref<8x1xf32, #tpu.memory_space<vmem>>, vector<8x1xf32>
    tpu.vector_store %arg11[%27, %c0_9], %26 {strides = array<i32>} : memref<8x1xf32, #tpu.memory_space<vmem>>, vector<8x1xf32>,
    %cst_10 = arith.constant dense<0xFF800000> : vector<8xf32>
    %29 = vector.multi_reduction <maximumf>, %11, %cst_10 [1] : vector<8x16xf32> to vector<8xf32>
    %30 = vector.shape_cast %29 : vector<8xf32> to vector<8x1xf32>
    %31 = arith.index_cast %1 : i32 to index
    %c0_11 = arith.constant 0 : index
    %32 = vector.load %arg9[%31, %c0_11] : memref<8x1xf32, #tpu.memory_space<vmem>>, vector<8x1xf32>
    %33 = arith.maximumf %32, %30 : vector<8x1xf32>
    %34 = arith.index_cast %1 : i32 to index
    %c0_12 = arith.constant 0 : index
    %35 = vector.load %arg10[%34, %c0_12] : memref<8x1xf32, #tpu.memory_space<vmem>>, vector<8x1xf32>
    %36 = arith.subf %32, %33 : vector<8x1xf32>
    %37 = math.exp %36 : vector<8x1xf32>
    %38 = arith.mulf %35, %37 : vector<8x1xf32>
    %39 = vector.broadcast %33 : vector<8x1xf32> to vector<8x16xf32>
    %40 = arith.subf %11, %39 : vector<8x16xf32>
    %41 = math.exp %40 : vector<8x16xf32>
    %cst_13 = arith.constant dense<0.000000e+00> : vector<8xf32>
    %42 = vector.multi_reduction <add>, %41, %cst_13 [1] : vector<8x16xf32> to vector<8xf32>
    %43 = vector.shape_cast %42 : vector<8xf32> to vector<8x1xf32>
    %44 = arith.addf %38, %43 : vector<8x1xf32>
    %45 = arith.index_cast %1 : i32 to index
    %c0_14 = arith.constant 0 : index
    %46 = vector.load %arg10[%45, %c0_14] : memref<8x1xf32, #tpu.memory_space<vmem>>, vector<8x1xf32>
    tpu.vector_store %arg10[%45, %c0_14], %44 {strides = array<i32>} : memref<8x1xf32, #tpu.memory_space<vmem>>, vector<8x1xf32>,
    %47 = arith.index_cast %1 : i32 to index
    %c0_15 = arith.constant 0 : index
    %48 = vector.load %arg9[%47, %c0_15] : memref<8x1xf32, #tpu.memory_space<vmem>>, vector<8x1xf32>
    tpu.vector_store %arg9[%47, %c0_15], %33 {strides = array<i32>} : memref<8x1xf32, #tpu.memory_space<vmem>>, vector<8x1xf32>,
    %c0_16 = arith.constant 0 : index
    %c0_17 = arith.constant 0 : index
    %49 = vector.load %arg6[%c0_16, %c0_17] : memref<1x8xi32, #tpu.memory_space<vmem>>, vector<1x8xi32>
    %c0_i32_18 = arith.constant 0 : i32
    %50 = vector.broadcast %c0_i32_18 : i32 to vector<1x8xi32>
    %51 = arith.cmpi sge, %49, %50 : vector<1x8xi32>
    %c1_i32 = arith.constant 1 : i32
    %52 = arith.muli %arg1, %c1_i32 : i32
    %c1_i32_19 = arith.constant 1 : i32
    %53 = arith.subi %c1_i32_19, %52 : i32
    %c1_i32_20 = arith.constant 1 : i32
    %54 = arith.minsi %c1_i32_20, %53 : i32
    %c0_i32_21 = arith.constant 0 : i32
    %55 = arith.maxsi %c0_i32_21, %54 : i32
    %c0_i32_22 = arith.constant 0 : i32
    %c0_i32_23 = arith.constant 0 : i32
    %56 = arith.subi %55, %c0_i32_23 : i32
    %57 = arith.addi %c0_i32_23, %56 : i32
    %c1_i32_24 = arith.constant 1 : i32
    scf.for %arg15 = %c0_i32_23 to %57 step %c1_i32_24  : i32 {
      %61 = arith.addi %52, %arg15 : i32
      %c8_i32_27 = arith.constant 8 : i32
      %62 = arith.muli %61, %c8_i32_27 : i32
      %63 = arith.addi %1, %62 : i32
      %64 = tpu.assume_multiple %63, 8 : i32
      %65 = arith.index_cast %64 : i32 to index
      %c0_28 = arith.constant 0 : index
      %66 = vector.load %arg12[%65, %c0_28] : memref<8x32xf32, #tpu.memory_space<vmem>>, vector<8x32xf32>
      %c0_29 = arith.constant 0 : index
      %c0_30 = arith.constant 0 : index
      %67 = vector.load %arg12[%c0_29, %c0_30] : memref<8x32xf32, #tpu.memory_space<vmem>>, vector<8x32xf32>
      %cst_31 = arith.constant dense<0.000000e+00> : vector<8x8xf32>
      %68 = tpu.matmul %66, %67, %cst_31 {dimension_numbers = #tpu.dot_dimension_numbers<[1], [1], [0], [0], [0, 0, 1, 0], [], []>} : vector<8x32xf32>, vector<8x32xf32>, vector<8x8xf32> -> vector<8x8xf32>
      %69 = arith.index_cast %64 : i32 to index
      %c0_32 = arith.constant 0 : index
      %70 = vector.load %arg5[%69, %c0_32] : memref<8x1xi32, #tpu.memory_space<vmem>>, vector<8x1xi32>
      %71 = vector.broadcast %70 : vector<8x1xi32> to vector<8x8xi32>
      %72 = vector.broadcast %49 : vector<1x8xi32> to vector<8x8xi32>
      %73 = arith.cmpi eq, %71, %72 : vector<8x8xi32>
      %74 = tpu.iota {dimensions = array<i32: 0>} : vector<8x8xi32>
      %75 = vector.broadcast %64 : i32 to vector<8x8xi32>
      %76 = arith.addi %74, %75 : vector<8x8xi32>
      %77 = tpu.iota {dimensions = array<i32: 1>} : vector<8x8xi32>
      %78 = arith.cmpi ne, %76, %77 : vector<8x8xi32>
      %79 = arith.andi %73, %78 : vector<8x8xi1>
      %80 = vector.broadcast %51 : vector<1x8xi1> to vector<8x8xi1>
      %81 = arith.andi %79, %80 : vector<8x8xi1>
      %cst_33 = arith.constant dense<true> : vector<8x8xi1>
      %82 = arith.xori %73, %cst_33 : vector<8x8xi1>
      %83 = vector.broadcast %51 : vector<1x8xi1> to vector<8x8xi1>
      %84 = arith.andi %82, %83 : vector<8x8xi1>
      %cst_34 = arith.constant 0x7F800000 : f32
      %85 = vector.broadcast %cst_34 : f32 to vector<8x8xf32>
      %86 = arith.select %81, %68, %85 : vector<8x8xi1>, vector<8x8xf32>
      %cst_35 = arith.constant dense<0x7F800000> : vector<8xf32>
      %87 = vector.multi_reduction <minimumf>, %86, %cst_35 [1] : vector<8x8xf32> to vector<8xf32>
      %88 = vector.shape_cast %87 : vector<8xf32> to vector<8x1xf32>
      %cst_36 = arith.constant 0xFF800000 : f32
      %89 = vector.broadcast %cst_36 : f32 to vector<8x8xf32>
      %90 = arith.select %84, %68, %89 : vector<8x8xi1>, vector<8x8xf32>
      %cst_37 = arith.constant dense<0xFF800000> : vector<8xf32>
      %91 = vector.multi_reduction <maximumf>, %90, %cst_37 [1] : vector<8x8xf32> to vector<8xf32>
      %92 = vector.shape_cast %91 : vector<8xf32> to vector<8x1xf32>
      %cst_38 = arith.constant 1.000000e-01 : f32
      %93 = vector.broadcast %cst_38 : f32 to vector<8x8xf32>
      %94 = arith.addf %68, %93 : vector<8x8xf32>
      %95 = vector.broadcast %88 : vector<8x1xf32> to vector<8x8xf32>
      %96 = arith.cmpf ogt, %94, %95 : vector<8x8xf32>
      %97 = arith.andi %84, %96 : vector<8x8xi1>
      %cst_39 = arith.constant 1.000000e-01 : f32
      %98 = vector.broadcast %cst_39 : f32 to vector<8x8xf32>
      %99 = arith.subf %68, %98 : vector<8x8xf32>
      %100 = vector.broadcast %92 : vector<8x1xf32> to vector<8x8xf32>
      %101 = arith.cmpf olt, %99, %100 : vector<8x8xf32>
      %102 = arith.andi %81, %101 : vector<8x8xi1>
      %cst_40 = arith.constant 5.000000e-01 : f32
      %103 = vector.broadcast %cst_40 : f32 to vector<8x8xf32>
      %104 = arith.subf %68, %103 : vector<8x8xf32>
      %cst_41 = arith.constant -2.000000e+00 : f32
      %105 = vector.broadcast %cst_41 : f32 to vector<8x8xf32>
      %106 = arith.mulf %105, %104 : vector<8x8xf32>
      %107 = math.exp %106 : vector<8x8xf32>
      %cst_42 = arith.constant 0.000000e+00 : f32
      %108 = vector.broadcast %cst_42 : f32 to vector<8x8xf32>
      %109 = arith.select %102, %107, %108 : vector<8x8xi1>, vector<8x8xf32>
      %cst_43 = arith.constant dense<0.000000e+00> : vector<8xf32>
      %110 = vector.multi_reduction <add>, %109, %cst_43 [1] : vector<8x8xf32> to vector<8xf32>
      %111 = vector.shape_cast %110 : vector<8xf32> to vector<8x1xf32>
      %cst_44 = arith.constant 5.000000e-01 : f32
      %112 = vector.broadcast %cst_44 : f32 to vector<8x8xf32>
      %113 = arith.subf %68, %112 : vector<8x8xf32>
      %cst_45 = arith.constant 4.000000e+01 : f32
      %114 = vector.broadcast %cst_45 : f32 to vector<8x8xf32>
      %115 = arith.mulf %114, %113 : vector<8x8xf32>
      %116 = math.exp %115 : vector<8x8xf32>
      %cst_46 = arith.constant 0.000000e+00 : f32
      %117 = vector.broadcast %cst_46 : f32 to vector<8x8xf32>
      %118 = arith.select %97, %116, %117 : vector<8x8xi1>, vector<8x8xf32>
      %cst_47 = arith.constant dense<0.000000e+00> : vector<8xf32>
      %119 = vector.multi_reduction <add>, %118, %cst_47 [1] : vector<8x8xf32> to vector<8xf32>
      %120 = vector.shape_cast %119 : vector<8xf32> to vector<8x1xf32>
      %121 = arith.extui %102 : vector<8x8xi1> to vector<8x8xi32>
      %122 = arith.sitofp %121 : vector<8x8xi32> to vector<8x8xf32>
      %cst_48 = arith.constant dense<0.000000e+00> : vector<8xf32>
      %123 = vector.multi_reduction <add>, %122, %cst_48 [1] : vector<8x8xf32> to vector<8xf32>
      %124 = vector.shape_cast %123 : vector<8xf32> to vector<8x1xf32>
      %125 = arith.extui %97 : vector<8x8xi1> to vector<8x8xi32>
      %126 = arith.sitofp %125 : vector<8x8xi32> to vector<8x8xf32>
      %cst_49 = arith.constant dense<0.000000e+00> : vector<8xf32>
      %127 = vector.multi_reduction <add>, %126, %cst_49 [1] : vector<8x8xf32> to vector<8xf32>
      %128 = vector.shape_cast %127 : vector<8xf32> to vector<8x1xf32>
      %c0_i32_50 = arith.constant 0 : i32
      %129 = vector.broadcast %c0_i32_50 : i32 to vector<8x1xi32>
      %130 = arith.cmpi sge, %70, %129 : vector<8x1xi32>
      %cst_51 = arith.constant 0.000000e+00 : f32
      %131 = vector.broadcast %cst_51 : f32 to vector<8x1xf32>
      %132 = arith.cmpf ogt, %124, %131 : vector<8x1xf32>
      %cst_52 = arith.constant 0.000000e+00 : f32
      %133 = vector.broadcast %cst_52 : f32 to vector<8x1xf32>
      %134 = arith.cmpf ogt, %128, %133 : vector<8x1xf32>
      %135 = arith.andi %132, %134 : vector<8x1xi1>
      %136 = arith.andi %135, %130 : vector<8x1xi1>
      %cst_53 = arith.constant 1.000000e+00 : f32
      %137 = vector.broadcast %cst_53 : f32 to vector<8x1xf32>
      %138 = arith.addf %137, %111 : vector<8x1xf32>
      %139 = math.log %138 : vector<8x1xf32>
      %cst_54 = arith.constant 5.000000e-01 : f32
      %140 = vector.broadcast %cst_54 : f32 to vector<8x1xf32>
      %141 = arith.mulf %140, %139 : vector<8x1xf32>
      %cst_55 = arith.constant 1.000000e+00 : f32
      %142 = vector.broadcast %cst_55 : f32 to vector<8x1xf32>
      %143 = arith.addf %142, %120 : vector<8x1xf32>
      %144 = math.log %143 : vector<8x1xf32>
      %cst_56 = arith.constant 2.500000e-02 : f32
      %145 = vector.broadcast %cst_56 : f32 to vector<8x1xf32>
      %146 = arith.mulf %145, %144 : vector<8x1xf32>
      %147 = arith.addf %141, %146 : vector<8x1xf32>
      %cst_57 = arith.constant 0.000000e+00 : f32
      %148 = vector.broadcast %cst_57 : f32 to vector<8x1xf32>
      %149 = arith.select %136, %147, %148 : vector<8x1xi1>, vector<8x1xf32>
      %150 = arith.index_cast %64 : i32 to index
      %c0_58 = arith.constant 0 : index
      %151 = vector.load %arg14[%150, %c0_58] : memref<8x1xf32, #tpu.memory_space<vmem>>, vector<8x1xf32>
      tpu.vector_store %arg14[%150, %c0_58], %149 {strides = array<i32>} : memref<8x1xf32, #tpu.memory_space<vmem>>, vector<8x1xf32>,
    }
    %c0_i32_25 = arith.constant 0 : i32
    %58 = arith.cmpi eq, %arg1, %c0_i32_25 : i32
    %59 = arith.extui %58 : i1 to i32
    %c0_i32_26 = arith.constant 0 : i32
    %60 = arith.cmpi ne, %59, %c0_i32_26 : i32
    scf.if %60 {
      %c0_i32_27 = arith.constant 0 : i32
      %61 = vector.broadcast %c0_i32_27 : i32 to vector<8x1xi32>
      %62 = arith.cmpi sge, %13, %61 : vector<8x1xi32>
      %63 = arith.index_cast %1 : i32 to index
      %c0_28 = arith.constant 0 : index
      %64 = vector.load %arg9[%63, %c0_28] : memref<8x1xf32, #tpu.memory_space<vmem>>, vector<8x1xf32>
      %65 = arith.index_cast %1 : i32 to index
      %c0_29 = arith.constant 0 : index
      %66 = vector.load %arg10[%65, %c0_29] : memref<8x1xf32, #tpu.memory_space<vmem>>, vector<8x1xf32>
      %67 = math.log %66 : vector<8x1xf32>
      %68 = arith.addf %64, %67 : vector<8x1xf32>
      %69 = arith.index_cast %1 : i32 to index
      %c0_30 = arith.constant 0 : index
      %70 = vector.load %arg11[%69, %c0_30] : memref<8x1xf32, #tpu.memory_space<vmem>>, vector<8x1xf32>
      %71 = arith.subf %68, %70 : vector<8x1xf32>
      %cst_31 = arith.constant 0.000000e+00 : f32
      %72 = vector.broadcast %cst_31 : f32 to vector<8x1xf32>
      %73 = arith.select %62, %71, %72 : vector<8x1xi1>, vector<8x1xf32>
      %cst_32 = arith.constant dense<0.000000e+00> : vector<1xf32>
      %74 = vector.multi_reduction <add>, %73, %cst_32 [0] : vector<8x1xf32> to vector<1xf32>
      %75 = vector.shape_cast %74 : vector<1xf32> to vector<1x1xf32>
      %76 = arith.index_cast %1 : i32 to index
      %c0_33 = arith.constant 0 : index
      %77 = vector.load %arg14[%76, %c0_33] : memref<8x1xf32, #tpu.memory_space<vmem>>, vector<8x1xf32>
      %cst_34 = arith.constant dense<0.000000e+00> : vector<1xf32>
      %78 = vector.multi_reduction <add>, %77, %cst_34 [0] : vector<8x1xf32> to vector<1xf32>
      %79 = vector.shape_cast %78 : vector<1xf32> to vector<1x1xf32>
      %80 = arith.addf %75, %79 : vector<1x1xf32>
      %cst_35 = arith.constant 1.250000e-01 : f32
      %81 = vector.broadcast %cst_35 : f32 to vector<1x1xf32>
      %82 = arith.mulf %80, %81 : vector<1x1xf32>
      %83 = arith.index_cast %1 : i32 to index
      %c0_36 = arith.constant 0 : index
      %84 = vector.load %arg11[%83, %c0_36] : memref<8x1xf32, #tpu.memory_space<vmem>>, vector<8x1xf32>
      %85 = arith.index_cast %1 : i32 to index
      %c0_37 = arith.constant 0 : index
      %86 = vector.load %arg9[%85, %c0_37] : memref<8x1xf32, #tpu.memory_space<vmem>>, vector<8x1xf32>
      %87 = arith.cmpf oeq, %84, %86 : vector<8x1xf32>
      %88 = arith.andi %62, %87 : vector<8x1xi1>
      %89 = arith.extui %88 : vector<8x1xi1> to vector<8x1xi32>
      %90 = arith.sitofp %89 : vector<8x1xi32> to vector<8x1xf32>
      %cst_38 = arith.constant dense<0.000000e+00> : vector<1xf32>
      %91 = vector.multi_reduction <add>, %90, %cst_38 [0] : vector<8x1xf32> to vector<1xf32>
      %92 = vector.shape_cast %91 : vector<1xf32> to vector<1x1xf32>
      %cst_39 = arith.constant 1.000000e+02 : f32
      %93 = vector.broadcast %cst_39 : f32 to vector<1x1xf32>
      %94 = arith.mulf %93, %92 : vector<1x1xf32>
      %cst_40 = arith.constant 1.250000e-01 : f32
      %95 = vector.broadcast %cst_40 : f32 to vector<1x1xf32>
      %96 = arith.mulf %94, %95 : vector<1x1xf32>
      %97 = vector.shape_cast %82 : vector<1x1xf32> to vector<1x1xf32>
      %98 = vector.broadcast %97 : vector<1x1xf32> to vector<8x128xf32>
      %c0_41 = arith.constant 0 : index
      %c0_42 = arith.constant 0 : index
      %99 = vector.load %arg7[%c0_41, %c0_42] : memref<8x128xf32, #tpu.memory_space<vmem>>, vector<8x128xf32>
      tpu.vector_store %arg7[%c0_41, %c0_42], %98 {strides = array<i32>} : memref<8x128xf32, #tpu.memory_space<vmem>>, vector<8x128xf32>,
      %100 = vector.shape_cast %96 : vector<1x1xf32> to vector<1x1xf32>
      %101 = vector.broadcast %100 : vector<1x1xf32> to vector<8x128xf32>
      %c0_43 = arith.constant 0 : index
      %c0_44 = arith.constant 0 : index
      %102 = vector.load %arg8[%c0_43, %c0_44] : memref<8x128xf32, #tpu.memory_space<vmem>>, vector<8x128xf32>
      tpu.vector_store %arg8[%c0_43, %c0_44], %101 {strides = array<i32>} : memref<8x128xf32, #tpu.memory_space<vmem>>, vector<8x128xf32>,
    } else {
    }
    return
  }
  func.func @transform_0(%arg0: i32, %arg1: i32) -> (i32, i32) {
    %c0_i32 = arith.constant 0 : i32
    %c0_i32_0 = arith.constant 0 : i32
    %c0_i32_1 = arith.constant 0 : i32
    return %c0_i32, %c0_i32_0 : i32, i32
  }
  func.func @transform_1(%arg0: i32, %arg1: i32) -> (i32, i32) {
    %c0_i32 = arith.constant 0 : i32
    %c0_i32_0 = arith.constant 0 : i32
    return %arg1, %c0_i32 : i32, i32
  }
  func.func @transform_2(%arg0: i32, %arg1: i32) -> (i32, i32) {
    %c0_i32 = arith.constant 0 : i32
    %c0_i32_0 = arith.constant 0 : i32
    return %c0_i32, %arg1 : i32, i32
  }
  func.func @transform_3(%arg0: i32, %arg1: i32) -> (i32, i32) {
    %c0_i32 = arith.constant 0 : i32
    %c0_i32_0 = arith.constant 0 : i32
    %c0_i32_1 = arith.constant 0 : i32
    return %c0_i32, %c0_i32_0 : i32, i32
  }
  func.func @transform_4(%arg0: i32, %arg1: i32) -> (i32, i32) {
    %c0_i32 = arith.constant 0 : i32
    %c0_i32_0 = arith.constant 0 : i32
    %c0_i32_1 = arith.constant 0 : i32
    return %c0_i32, %c0_i32_0 : i32, i32
  }
  func.func @transform_5(%arg0: i32, %arg1: i32) -> (i32, i32) {
    %c0_i32 = arith.constant 0 : i32
    %c0_i32_0 = arith.constant 0 : i32
    return %arg0, %c0_i32 : i32, i32
  }
  func.func @transform_6(%arg0: i32, %arg1: i32) -> (i32, i32) {
    %c0_i32 = arith.constant 0 : i32
    %c0_i32_0 = arith.constant 0 : i32
    return %arg0, %c0_i32 : i32, i32
  }
}

</mosaic_0001>

<llo_original>
// kernel: ms_softmax_loss.1
$region0: #{ms_softmax_loss.1}
  #allocation0 [shape = 'u32[]', space=smem, size = 0x4, offset = 0x4, fixed_abs, tag = 'smem constant byte address 0x4 - core index']
  #allocation1 [shape = 'u32[72,128]{1,0:T(1,128)}', space=vmem, size = 0x9000, scoped, tag = 'internal scratch']
  #allocation2 [shape = 'f32[8,1]{1,0:T(8,128)}', space=vmem, size = 0x1000, scoped, tag = 'scratch operand']
  #allocation3 [shape = 'f32[8,1]{1,0:T(8,128)}', space=vmem, size = 0x1000, scoped, tag = 'scratch operand']
  #allocation4 [shape = 'f32[8,1]{1,0:T(8,128)}', space=vmem, size = 0x1000, scoped, tag = 'scratch operand']
  #allocation5 [shape = 'f32[8,32]{1,0:T(8,128)}', space=vmem, size = 0x1000, scoped, tag = 'scratch operand']
  #allocation6 [shape = 'bf16[8,32]{1,0:T(8,128)(2,1)}', space=vmem, size = 0x800, scoped, tag = 'scratch operand']
  #allocation7 [shape = 'f32[8,1]{1,0:T(8,128)}', space=vmem, size = 0x1000, scoped, tag = 'scratch operand']
  %s0 = inlined_call_operand.vmem [shape: f32[8,32], index: 0, kind: input, shape index: {}]
  %s1 = inlined_call_operand.vmem [shape: bf16[16,32], index: 1, kind: input, shape index: {}]
  %s2 = inlined_call_operand.vmem [shape: f32[1,16], index: 2, kind: input, shape index: {}]
  %s3 = inlined_call_operand.vmem [shape: s32[8,1], index: 3, kind: input, shape index: {}]
  %s4 = inlined_call_operand.vmem [shape: s32[1,8], index: 4, kind: input, shape index: {}]
  %s5 = inlined_call_operand.vmem [shape: f32[8,128], index: 5, kind: output, shape index: {0}]
  %s6 = inlined_call_operand.vmem [shape: f32[8,128], index: 6, kind: output, shape index: {1}]
  %7 = xla_tuple %s5, %s6
  %s8 = sld [smem:[#allocation0]]
  $region53: #{ms_softmax_loss.1} parent=0
    _
  %s10 = ssub.s32 1, %s8
  %s11 = scalar_select 0, %s10, %s8
  // Predicated region
  $region2: #{ms_softmax_loss.1} parent=0 // pred_check
    _
  $region3: #{ms_softmax_loss.1} parent=0 // pred_check_branch
    %13 = sbr.rel (0) target = $region5
  $region4: #{ms_softmax_loss.1} parent=0 // pred_region
    _
  $region5: #{ms_softmax_loss.1} parent=0 // pred_fallthru
    _
  // Predicated region
  $region6: #{ms_softmax_loss.1} parent=0 // pred_check
    _
  $region7: #{ms_softmax_loss.1} parent=0 // pred_check_branch
    %15 = sbr.rel (0) target = $region9
  $region8: #{ms_softmax_loss.1} parent=0 // pred_region
    _
  $region9: #{ms_softmax_loss.1} parent=0 // pred_fallthru
    _
  // Predicated region
  $region10: #{ms_softmax_loss.1} parent=0 // pred_check
    _
  $region11: #{ms_softmax_loss.1} parent=0 // pred_check_branch
    %17 = sbr.rel (0) target = $region13
  $region12: #{ms_softmax_loss.1} parent=0 // pred_region
    _
  $region13: #{ms_softmax_loss.1} parent=0 // pred_fallthru
    _
  // Predicated region
  $region14: #{ms_softmax_loss.1} parent=0 // pred_check
    _
  $region15: #{ms_softmax_loss.1} parent=0 // pred_check_branch
    %19 = sbr.rel (0) target = $region17
  $region16: #{ms_softmax_loss.1} parent=0 // pred_region
    _
  $region17: #{ms_softmax_loss.1} parent=0 // pred_fallthru
    _
  // Predicated region
  $region18: #{ms_softmax_loss.1} parent=0 // pred_check
    _
  $region19: #{ms_softmax_loss.1} parent=0 // pred_check_branch
    %21 = sbr.rel (0) target = $region21
  $region20: #{ms_softmax_loss.1} parent=0 // pred_region
    _
  $region21: #{ms_softmax_loss.1} parent=0 // pred_fallthru
    _
  %s23 = smul.u32 0, 8
  %p24 = scmp.eq.s32.totalorder 0, 0
  // Predicated region
  $region22: #{ms_softmax_loss.1} parent=0 // pred_check
    %p25 = pneg %p24
  $region23: #{ms_softmax_loss.1} parent=0 // pred_check_branch
    %27 = sbr.rel (%p25) target = $region25
  $region24: #{ms_softmax_loss.1} parent=0 // pred_region
    %s28 = scalar_lea.vmem [#allocation2], %s23
    %vm29 = vcmask 7168
    %30 = vst.msk [vmem:[%s28] sm:$0xff] %vm29, -1e+30
    %s31 = scalar_lea.vmem [#allocation3], %s23
    %32 = vst.msk [vmem:[%s31] sm:$0xff] %vm29, 0.0
    %s33 = scalar_lea.vmem [#allocation4], %s23
    %34 = vst.msk [vmem:[%s33] sm:$0xff] %vm29, 0.0
    %s35 = scalar_lea.vmem [#allocation7], %s23
    %36 = vst.msk [vmem:[%s35] sm:$0xff] %vm29, 0.0
    %v37 = vld [vmem:[%s0] sm:$0xff]
    %v38 = vmul.f32 %v37, %v37
    %vm39 = vcmask 261120
    %v40 = vsel %vm39, %v38, 0.0
    %41 = vadd.xlane.f32.xlu0 %v40
    %v42 = vpop.xlane.xlu0 %41
    %v43 = vadd.f32 %v42, 1e-12
    %v44 = vrsqrt.pop %v43
    %v45 = vmul.f32 %v44, %v43
    %v46 = vmul.f32 %v45, %v44
    %v47 = vmul.f32 0.5, %v46
    %v48 = vsub.f32 1.5, %v47
    %v49 = vmul.f32 %v44, %v48
    %vm50 = vweird.f32 %v43
    %vm51 = vweird.f32 %v44
    %vm52 = vmor %vm50, %vm51
    %v53 = vsel %vm52, %v44, %v49
    %v54 = vmul.f32 %v37, %v53
    %55 = vst.msk [vmem:[#allocation5] sm:$0xff] %vm39, %v54
    %s56 = scalar_lea.vmem %s0, %s23
    %v57 = vld [vmem:[%s56] sm:$0xff]
    %v58 = vpack.c.bf16 %v57, %v57
    %s59 = sshra.s32 %s23, 3
    %s60 = sand.u32 %s23, 7
    %s61 = smul.addr %s59, 4
    %s62 = scalar_lea.vmem [#allocation6], %s61
    %vm63 = vcmask 257024
    %64 = vst.msk [vmem:[%s62] sm:$0xf] %vm63, %v58
  $region25: #{ms_softmax_loss.1} parent=0 // pred_fallthru
    _
  %s65 = sshra.s32 %s23, 3
  %s66 = sand.u32 %s23, 7
  %s67 = smul.addr %s65, 4
  %s68 = scalar_lea.vmem [#allocation6], %s67
  %v69 = vld [vmem:[%s68] sm:$0xf]
  %v70 = vld [vmem:[%s1] sm:$0xf]
  %v71 = vld [vmem:[%s1 + $0x4] sm:$0xf]
  %v72 = vld [vmem:[%s2] sm:$0x1]
  %v74 = vperm.slane %v72, 0
  %v78 = vunpack.c.l.b16 %v70
  %v79 = vunpack.c.l.b16 %v71
  %v80 = vpack.c.b16 %v79, %v78
  %vm81 = vcmask 261120
  %v83 = vsel %vm81, %v69, 0
  %v86 = vsel %vm81, %v80, 0
  %88 = vmatpush.bf16.xpose.msra.mxu0 0
  %89 = vmatpush.bf16.xpose.msra.mxu0 0
  %90 = vmatpush.bf16.xpose.msra.mxu0 0
  %91 = vmatpush.bf16.xpose.msra.mxu0 0
  %92 = vmatpush.bf16.xpose.msra.mxu0 0
  %93 = vmatpush.bf16.xpose.msra.mxu0 0
  %94 = vmatpush.bf16.xpose.msra.mxu0 0
  %95 = vmatpush.bf16.xpose.msra.mxu0 %v86
  %96 = vmatmul.bf16.gmra.mxu0 %v83
  %v97 = vpop.f32.mrf.mxu0
  %v98 = vadd.f32 %v74, %v97
  %v99 = vpop.f32.mrf.mxu0
  %100 = vdwg.mxu0
  %s101 = scalar_lea.vmem %s3, %s23
  %v102 = vld [vmem:[%s101] sm:$0xff]
  %v103 = vlaneseq
  %v104 = vand.u32 %v103, 127
  %s105 = smul.u32 0, 16
  %v106 = vstv %s105
  %v107 = vadd.s32 %v104, %v106
  %s108 = scalar_lea.vmem [#allocation4], %s23
  %v109 = vld [vmem:[%s108] sm:$0xff]
  %110 = vset.pattern.permute.xlu0 0
  %111 = vperm.xlu0 %110, %v102
  %v112 = vpop.permute.xlu0 %111
  %vm113 = vcmp.eq.s32.totalorder %v107, %v112
  %v114 = vsel %vm113, %v98, 0.0
  %vm115 = vcmask 130048
  %v116 = vsel %vm115, %v114, 0.0
  %117 = vadd.xlane.f32.xlu0 %v116
  %v118 = vpop.xlane.xlu0 %117
  %v119 = vadd.f32 %v109, %v118
  %vm120 = vcmask 7168
  %121 = vst.msk [vmem:[%s108] sm:$0xff] %vm120, %v119
  %v122 = vsel %vm115, %v98, -inf
  %123 = vmax.xlane.f32.xlu0 %v122
  %v124 = vpop.xlane.xlu0 %123
  %s125 = scalar_lea.vmem [#allocation2], %s23
  %v126 = vld [vmem:[%s125] sm:$0xff]
  %v127 = vmax.f32 %v126, %v124
  %s128 = scalar_lea.vmem [#allocation3], %s23
  %v129 = vld [vmem:[%s128] sm:$0xff]
  %v130 = vsub.f32 %v126, %v127
  %v131 = vmul.f32 %v130, 1.442695
  %v132 = vpow.pop %v131
  %v133 = vmul.f32 %v129, %v132
  %135 = vset.pattern.permute.xlu0 0
  %136 = vperm.xlu0 %135, %v127
  %v137 = vpop.permute.xlu0 %136
  %v139 = vsub.f32 %v98, %v137
  %v140 = vmul.f32 %v139, 1.442695
  %v141 = vpow.pop %v140
  %v142 = vsel %vm115, %v141, 0.0
  %143 = vadd.xlane.f32.xlu0 %v142
  %v144 = vpop.xlane.xlu0 %143
  %v145 = vadd.f32 %v133, %v144
  %146 = vst.msk [vmem:[%s128] sm:$0xff] %vm120, %v145
  %147 = vst.msk [vmem:[%s125] sm:$0xff] %vm120, %v127
  %v148 = vld [vmem:[%s4] sm:$0x1]
  %vm149 = vcmp.ge.s32.totalorder %v148, 0
  %s150 = ssub.s32 1, 0
  %p151 = scmp.lt.s32.totalorder %s150, 1
  %s152 = scalar_select %p151, %s150, 1
  %p153 = scmp.gt.s32.totalorder %s152, 0
  %s154 = scalar_select %p153, %s152, 0
  // While loop
  $region26: #{ms_softmax_loss.1} parent=0 // loop_pre_header
    _
  $region27: #{ms_softmax_loss.1} parent=0 // loop_header
    %s156 = sphi 0, %s158
    %p157 = scmp.ge.s32.totalorder %s156, %s154
  $region28: #{ms_softmax_loss.1} parent=0 // loop_header_branch
    %160 = sbr.rel (%p157) target = $region32
  $region29: #{ms_softmax_loss.1} parent=0 // loop_body
    %s161 = sadd.s32 0, %s156
    %s162 = smul.u32 %s161, 8
    %s163 = sadd.s32 %s23, %s162
    %s164 = scalar_lea.vmem [#allocation5], %s163
    %v165 = vld [vmem:[%s164] sm:$0xff]
    %v166 = vld [vmem:[#allocation5] sm:$0xff]
    %v168 = vsel %vm81, %v165, 0
    %v171 = vsel %vm81, %v166, 0
    %173 = vmatpush.xpose.msra.mxu0 0.0
    %174 = vmatpush.xpose.msra.mxu0 0.0
    %175 = vmatpush.xpose.msra.mxu0 0.0
    %176 = vmatpush.xpose.msra.mxu0 0.0
    %177 = vmatpush.xpose.msra.mxu0 0.0
    %178 = vmatpush.xpose.msra.mxu0 0.0
    %179 = vmatpush.xpose.msra.mxu0 0.0
    %180 = vmatpush.xpose.msra.mxu0 0.0
    %181 = vmatpush.xpose.msra.mxu0 0.0
    %182 = vmatpush.xpose.msra.mxu0 0.0
    %183 = vmatpush.xpose.msra.mxu0 0.0
    %184 = vmatpush.xpose.msra.mxu0 0.0
    %185 = vmatpush.xpose.msra.mxu0 0.0
    %186 = vmatpush.xpose.msra.mxu0 0.0
    %187 = vmatpush.xpose.msra.mxu0 0.0
    %188 = vmatpush.xpose.msra.mxu0 %v171
    %189 = vmatmul.f32.gmra.mxu0 %v168
    %v190 = vpop.f32.mrf.mxu0
    %v191 = vadd.f32 0.0, %v190
    %192 = vdwg.mxu0
    %s193 = scalar_lea.vmem %s3, %s163
    %v194 = vld [vmem:[%s193] sm:$0xff]
    %195 = vset.pattern.permute.xlu0 0
    %196 = vperm.xlu0 %195, %v194
    %v197 = vpop.permute.xlu0 %196
    %v198 = vperm.slane %v148, 0
    %vm199 = vcmp.eq.s32.totalorder %v197, %v198
    %v200 = vlaneseq
    %v201 = vshrl.u32 %v200, 7
    %v202 = vstv %s163
    %v203 = vadd.s32 %v201, %v202
    %vm204 = vcmp.ne.s32.totalorder %v203, %v104
    %vm205 = vmand %vm199, %vm204
    %v206 = vsel %vm149, 1, 0
    %v207 = vperm.slane %v206, 0
    %vm208 = vcmp.eq.s32.totalorder %v207, 1
    %vm209 = vmand %vm205, %vm208
    %vm210 = vmxor %vm199, 1
    %vm211 = vmand %vm210, %vm208
    %v212 = vsel %vm209, %v191, inf
    %vm213 = vcmask 64512
    %v214 = vsel %vm213, %v212, inf
    %215 = vmin.xlane.f32.xlu0 %v214
    %v216 = vpop.xlane.xlu0 %215
    %v217 = vsel %vm211, %v191, -inf
    %v218 = vsel %vm213, %v217, -inf
    %219 = vmax.xlane.f32.xlu0 %v218
    %v220 = vpop.xlane.xlu0 %219
    %v221 = vadd.f32 %v191, 0.1
    %vm222 = vcmp.gt.f32.partialorder %v221, %v216
    %vm223 = vmand %vm211, %vm222
    %v224 = vsub.f32 %v191, 0.1
    %vm225 = vcmp.lt.f32.partialorder %v224, %v220
    %vm226 = vmand %vm209, %vm225
    %v227 = vsub.f32 %v191, 0.5
    %v228 = vmul.f32 %v227, -2.0
    %v229 = vmul.f32 %v228, 1.442695
    %v230 = vpow.pop %v229
    %v231 = vsel %vm226, %v230, 0.0
    %v232 = vsel %vm213, %v231, 0.0
    %233 = vadd.xlane.f32.xlu0 %v232
    %v234 = vpop.xlane.xlu0 %233
    %v235 = vmul.f32 %v227, 40.0
    %v236 = vmul.f32 %v235, 1.442695
    %v237 = vpow.pop %v236
    %v238 = vsel %vm223, %v237, 0.0
    %v239 = vsel %vm213, %v238, 0.0
    %240 = vadd.xlane.f32.xlu0 %v239
    %v241 = vpop.xlane.xlu0 %240
    %v242 = vsel %vm226, 1, 0
    %v243 = vcvt.s32.f32 %v242
    %v244 = vsel %vm213, %v243, 0.0
    %245 = vadd.xlane.f32.xlu0 %v244
    %v246 = vpop.xlane.xlu0 %245
    %v247 = vsel %vm223, 1, 0
    %v248 = vcvt.s32.f32 %v247
    %v249 = vsel %vm213, %v248, 0.0
    %250 = vadd.xlane.f32.xlu0 %v249
    %v251 = vpop.xlane.xlu0 %250
    %vm252 = vcmp.ge.s32.totalorder %v194, 0
    %vm253 = vcmp.gt.f32.partialorder %v246, 0.0
    %vm254 = vcmp.gt.f32.partialorder %v251, 0.0
    %vm255 = vmand %vm253, %vm254
    %vm256 = vmand %vm255, %vm252
    %v257 = vadd.f32 %v234, 1.0
    %v258 = vlog2.pop %v257
    %v259 = vmul.f32 %v258, 0.6931472
    %v260 = vmul.f32 %v259, 0.5
    %v261 = vadd.f32 %v241, 1.0
    %v262 = vlog2.pop %v261
    %v263 = vmul.f32 %v262, 0.6931472
    %v264 = vmul.f32 %v263, 0.025
    %v265 = vadd.f32 %v260, %v264
    %v266 = vsel %vm256, %v265, 0.0
    %s267 = scalar_lea.vmem [#allocation7], %s163
    %268 = vst.msk [vmem:[%s267] sm:$0xff] %vm120, %v266
  $region30: #{ms_softmax_loss.1} parent=0 // loop_footer
    %s158 = sadd.s32 %s156, 1
  $region31: #{ms_softmax_loss.1} parent=0 // loop_footer_branch
    %155 = sbr.rel target = $region27
  $region32: #{ms_softmax_loss.1} parent=0 // loop_exit
    _
  // Predicated region
  $region33: #{ms_softmax_loss.1} parent=0 // pred_check
    %p269 = pneg %p24
  $region34: #{ms_softmax_loss.1} parent=0 // pred_check_branch
    %271 = sbr.rel (%p269) target = $region36
  $region35: #{ms_softmax_loss.1} parent=0 // pred_region
    %vm272 = vcmp.ge.s32.totalorder %v102, 0
    %v273 = vld [vmem:[%s125] sm:$0xff]
    %v274 = vld [vmem:[%s128] sm:$0xff]
    %v275 = vlog2.pop %v274
    %v276 = vmul.f32 %v275, 0.6931472
    %v277 = vadd.f32 %v273, %v276
    %v278 = vld [vmem:[%s108] sm:$0xff]
    %v279 = vsub.f32 %v277, %v278
    %v280 = vsel %vm272, %v279, 0.0
    %v281 = vsel %vm120, %v280, 0.0
    %v282 = vrot.slane %v281, 4
    %v283 = vadd.f32 %v281, %v282
    %v284 = vrot.slane %v283, 2
    %v285 = vadd.f32 %v283, %v284
    %v286 = vrot.slane %v285, 1
    %v287 = vadd.f32 %v285, %v286
    %s288 = scalar_lea.vmem [#allocation7], %s23
    %v289 = vld [vmem:[%s288] sm:$0xff]
    %v290 = vsel %vm120, %v289, 0.0
    %v291 = vrot.slane %v290, 4
    %v292 = vadd.f32 %v290, %v291
    %v293 = vrot.slane %v292, 2
    %v294 = vadd.f32 %v292, %v293
    %v295 = vrot.slane %v294, 1
    %v296 = vadd.f32 %v294, %v295
    %v297 = vadd.f32 %v287, %v296
    %v298 = vmul.f32 %v297, 0.125
    %vm299 = vcmp.eq.f32.partialorder %v278, %v273
    %vm300 = vmand %vm272, %vm299
    %v301 = vsel %vm300, 1, 0
    %v302 = vcvt.s32.f32 %v301
    %v303 = vsel %vm120, %v302, 0.0
    %v304 = vrot.slane %v303, 4
    %v305 = vadd.f32 %v303, %v304
    %v306 = vrot.slane %v305, 2
    %v307 = vadd.f32 %v305, %v306
    %v308 = vrot.slane %v307, 1
    %v309 = vadd.f32 %v307, %v308
    %v310 = vmul.f32 %v309, 100.0
    %v311 = vmul.f32 %v310, 0.125
    %313 = vset.pattern.permute.xlu0 0
    %314 = vperm.xlu0 %313, %v298
    %v315 = vpop.permute.xlu0 %314
    %317 = vst [vmem:[%s5] sm:$0xff] %v315
    %319 = vset.pattern.permute.xlu0 0
    %320 = vperm.xlu0 %319, %v311
    %v321 = vpop.permute.xlu0 %320
    %323 = vst [vmem:[%s6] sm:$0xff] %v321
  $region36: #{ms_softmax_loss.1} parent=0 // pred_fallthru
    _
  // Predicated region
  $region37: #{ms_softmax_loss.1} parent=0 // pred_check
    _
  $region38: #{ms_softmax_loss.1} parent=0 // pred_check_branch
    %325 = sbr.rel (0) target = $region40
  $region39: #{ms_softmax_loss.1} parent=0 // pred_region
    _
  $region40: #{ms_softmax_loss.1} parent=0 // pred_fallthru
    _
  // Predicated region
  $region41: #{ms_softmax_loss.1} parent=0 // pred_check
    _
  $region42: #{ms_softmax_loss.1} parent=0 // pred_check_branch
    %327 = sbr.rel (0) target = $region44
  $region43: #{ms_softmax_loss.1} parent=0 // pred_region
    _
  $region44: #{ms_softmax_loss.1} parent=0 // pred_fallthru
    _
  // Predicated region
  $region45: #{ms_softmax_loss.1} parent=0 // pred_check
    _
  $region46: #{ms_softmax_loss.1} parent=0 // pred_check_branch
    %329 = sbr.rel (0) target = $region48
  $region47: #{ms_softmax_loss.1} parent=0 // pred_region
    _
  $region48: #{ms_softmax_loss.1} parent=0 // pred_fallthru
    _
  // Predicated region
  $region49: #{ms_softmax_loss.1} parent=0 // pred_check
    _
  $region50: #{ms_softmax_loss.1} parent=0 // pred_check_branch
    %331 = sbr.rel (0) target = $region52
  $region51: #{ms_softmax_loss.1} parent=0 // pred_region
    _
  $region52: #{ms_softmax_loss.1} parent=0 // pred_fallthru
    _

</llo_original>
